<compile_context>
chip_gen: v7x
topology: tpu7x:2x2x1
jax: 0.10.0
libtpu: 0.0.40
codegen_flags: <defaults>
</compile_context>

<pallas_src>
import functools

import jax
import jax.numpy as jnp
from jax.experimental import pallas as pl
from jax.experimental.pallas import tpu as pltpu

_LANE_CANDIDATES = (1024, 512, 256, 128)   # preferred lane-dense last dims
_MAX_TILE_ELEMS = 1 << 20                  # <= 4 MiB f32 per input tile (VMEM-padded)


def _round_up(x: int, m: int) -> int:
    return -(-x // m) * m


def _focal_loss_kernel(logits_ref, target_ref, out_ref, acc_ref, *,
                       alpha, gamma, eps, valid_rows, block_rows, lane,
                       num_blocks, inner, row_mask_needed):
    c = pl.program_id(0)          # core-parallel axis (v7x: 2 TensorCores)
    i = pl.program_id(1)          # streaming / reduction axis
    blk = c * inner + i           # global block id (may exceed num_blocks - 1)

    @pl.when(i == 0)
    def _init():
        acc_ref[...] = jnp.zeros_like(acc_ref)

    x = logits_ref[...].astype(jnp.float32)
    t = target_ref[...].astype(jnp.float32)

    # sigmoid(x) = 0.5*tanh(x/2) + 0.5  -> single EUP op, numerically stable.
    probs = 0.5 * jnp.tanh(0.5 * x) + 0.5
    p_eps = probs + eps
    q_eps = (1.0 - probs) + eps
    log_p = jnp.log(p_eps)
    log_q = jnp.log(q_eps)

    ig = int(gamma)
    if float(gamma) == float(ig) and 0 <= ig <= 4:
        # Small integer gamma (default 2.0): pure VPU multiplies, no extra EUP.
        pow_q = jnp.ones_like(q_eps)
        pow_p = jnp.ones_like(p_eps)
        for _ in range(ig):
            pow_q = pow_q * q_eps
            pow_p = pow_p * p_eps
    else:
        # Reuse the logs already needed for the loss: x**g = exp(g*log(x)).
        pow_q = jnp.exp(gamma * log_q)
        pow_p = jnp.exp(gamma * log_p)

    loss = ((-alpha) * pow_q * t * log_p
            - (1.0 - alpha) * pow_p * (1.0 - t) * log_q)

    def _accumulate(val):
        # Fold rows into the small (8, lane) accumulator: same number of VPU
        # adds as a full-tile accumulator, but negligible VMEM RMW traffic.
        acc_ref[...] += val.reshape(block_rows // 8, 8, lane).sum(axis=0)

    if row_mask_needed:
        @pl.when(blk < num_blocks - 1)
        def _full():
            _accumulate(loss)

        @pl.when(blk == num_blocks - 1)
        def _tail():
            # Only the last valid block can contain out-of-bounds (garbage)
            # rows; select is NaN-safe so garbage contributes exactly 0.
            row = jax.lax.broadcasted_iota(jnp.int32, (block_rows, lane), 0)
            valid = (blk * block_rows + row) < valid_rows
            _accumulate(jnp.where(valid, loss, 0.0))
    else:
        @pl.when(blk < num_blocks)      # skips only the (clamped) overhang step
        def _full():
            _accumulate(loss)

    @pl.when(i == pl.num_programs(1) - 1)
    def _finalize():
        out_ref[...] = jnp.broadcast_to(jnp.sum(acc_ref[...]), (1, 8, 128))


def binary_focal_loss_with_logits(
    logits: jax.Array,   # [N, 1, H, W], any float dtype (cast in-kernel)
    target: jax.Array,   # [N, H, W], any dtype (cast in-kernel)
    alpha: float = 0.25,
    gamma: float = 2.0,
    eps: float = 1e-08,
) -> jax.Array:
    n, c, h, w = logits.shape
    assert c == 1, "broadcast with target.unsqueeze(1) requires C == 1"
    assert target.shape == (n, h, w)
    total = n * h * w

    # Pick a lane-dense, copy-free 2-D view: total == rows * lane exactly, so
    # there is no element-level padding and no jnp.pad HBM round trip.
    lane = None
    for cand in _LANE_CANDIDATES:
        if total % cand == 0:
            lane = cand
            break
    if lane is None:
        lane = w                     # native last dim always divides total
    rows = total // lane

    lane_padded = _round_up(lane, 128)                      # VMEM lane padding
    max_rows = max(8, (_MAX_TILE_ELEMS // lane_padded) // 8 * 8)
    block_rows = min(_round_up(rows, 8), max_rows)          # multiple of 8
    num_blocks = -(-rows // block_rows)
    inner = -(-num_blocks // 2)                             # blocks per core
    row_mask_needed = (num_blocks * block_rows) != rows

    # Contiguous reshapes are free (bitcast); C == 1 keeps element order aligned.
    logits2d = logits.reshape(rows, lane)
    target2d = target.reshape(rows, lane)   # streamed in native dtype

    kernel = functools.partial(
        _focal_loss_kernel,
        alpha=float(alpha), gamma=float(gamma), eps=float(eps),
        valid_rows=rows, block_rows=block_rows, lane=lane,
        num_blocks=num_blocks, inner=inner, row_mask_needed=row_mask_needed,
    )

    def _in_map(ci, ii):
        # Clamp so the (at most one) overhang step of the 2-way core split
        # re-reads the last valid block; the kernel skips accumulating it.
        return (jnp.minimum(ci * inner + ii, num_blocks - 1), 0)

    bytes_in = (logits2d.size * logits2d.dtype.itemsize
                + target2d.size * target2d.dtype.itemsize)
    cost = pl.CostEstimate(
        flops=16 * total,
        transcendentals=3 * total,          # tanh + 2 logs (gamma==2 path)
        bytes_accessed=bytes_in + 2 * 8 * 128 * 4,
    )

    out = pl.pallas_call(
        kernel,
        out_shape=jax.ShapeDtypeStruct((2, 8, 128), jnp.float32),
        grid_spec=pltpu.PrefetchScalarGridSpec(
            num_scalar_prefetch=0,
            grid=(2, inner),
            in_specs=[
                pl.BlockSpec((block_rows, lane), _in_map),
                pl.BlockSpec((block_rows, lane), _in_map),
            ],
            out_specs=pl.BlockSpec((1, 8, 128), lambda ci, ii: (ci, 0, 0)),
            scratch_shapes=[pltpu.VMEM((8, lane), jnp.float32)],
        ),
        compiler_params=pltpu.CompilerParams(
            dimension_semantics=("parallel", "arbitrary"),
            vmem_limit_bytes=32 * 1024 * 1024,
        ),
        cost_estimate=cost,
    )(logits2d, target2d)

    # Per-core partial sums -> mean.
    return (out[0, 0, 0] + out[1, 0, 0]) / jnp.float32(total)


class BinaryFocalLossWithLogits:
    def __init__(self, alpha: float, gamma: float = 2.0) -> None:
        self.alpha = alpha
        self.gamma = gamma
        self.eps = 1e-08

    def __call__(self, logits: jax.Array, target: jax.Array) -> jax.Array:
        return binary_focal_loss_with_logits(
            logits, target, self.alpha, self.gamma, self.eps
        )


def _reference(logits, target, alpha, gamma, eps):
    probs = jax.nn.sigmoid(logits.astype(jnp.float32))
    t = target.astype(jnp.float32)[:, None, :, :]
    loss = (
        -alpha * jnp.power(1.0 - probs + eps, gamma) * t * jnp.log(probs + eps)
        - (1.0 - alpha)
        * jnp.power(probs + eps, gamma)
        * (1.0 - t)
        * jnp.log(1.0 - probs + eps)
    )
    return jnp.mean(loss[:, 0, :, :])


if __name__ == "__main__":
    N, H, W = 2, 16, 16
    key = jax.random.PRNGKey(0)
    k_logits, k_target = jax.random.split(key)

    logits = jax.random.normal(k_logits, (N, 1, H, W), dtype=jnp.float32)
    target = (jax.random.uniform(k_target, (N, H, W)) > 0.5).astype(jnp.float32)

    loss_fn = BinaryFocalLossWithLogits(alpha=0.25, gamma=2.0)
    out = loss_fn(logits, target)
    jax.block_until_ready(out)

    ref = _reference(logits, target, 0.25, 2.0, 1e-08)
    assert jnp.allclose(out, ref, atol=1e-5, rtol=1e-5), (out, ref)

    print("KERNEL_OK")
</pallas_src>

<mosaic_0001>
module attributes {stable_mosaic.version = 11 : i64} {
  func.func @_focal_loss_kernel(%arg0: i32, %arg1: i32, %arg2: memref<8x512xf32, #tpu.memory_space<vmem>>, %arg3: memref<8x512xf32, #tpu.memory_space<vmem>>, %arg4: memref<1x8x128xf32, #tpu.memory_space<vmem>>, %arg5: memref<8x512xf32, #tpu.memory_space<vmem>>) attributes {dimension_semantics = [#tpu.dimension_semantics<parallel>, #tpu.dimension_semantics<arbitrary>], iteration_bounds = array<i64: 2, 1>, scalar_prefetch = 0 : i64, scratch_operands = 1 : i64, tpu.core_type = #tpu.core_type<tc>, window_params = [{transform_indices = @transform_0, window_bounds = array<i64: 8, 512>}, {transform_indices = @transform_1, window_bounds = array<i64: 8, 512>}, {transform_indices = @transform_2, window_bounds = array<i64: 1, 8, 128>}]} {
    %c1_i32 = arith.constant 1 : i32
    %0 = arith.muli %arg0, %c1_i32 : i32
    %1 = arith.addi %0, %arg1 : i32
    %c0_i32 = arith.constant 0 : i32
    %2 = arith.cmpi eq, %arg1, %c0_i32 : i32
    %3 = arith.extui %2 : i1 to i32
    %c0_i32_0 = arith.constant 0 : i32
    %4 = arith.cmpi ne, %3, %c0_i32_0 : i32
    scf.if %4 {
      %cst_20 = arith.constant 0.000000e+00 : f32
      %48 = vector.broadcast %cst_20 : f32 to vector<8x512xf32>
      %c0_21 = arith.constant 0 : index
      %c0_22 = arith.constant 0 : index
      %49 = vector.load %arg5[%c0_21, %c0_22] : memref<8x512xf32, #tpu.memory_space<vmem>>, vector<8x512xf32>
      tpu.vector_store %arg5[%c0_21, %c0_22], %48 {strides = array<i32>} : memref<8x512xf32, #tpu.memory_space<vmem>>, vector<8x512xf32>,
    } else {
    }
    %c0 = arith.constant 0 : index
    %c0_1 = arith.constant 0 : index
    %5 = vector.load %arg2[%c0, %c0_1] : memref<8x512xf32, #tpu.memory_space<vmem>>, vector<8x512xf32>
    %c0_2 = arith.constant 0 : index
    %c0_3 = arith.constant 0 : index
    %6 = vector.load %arg3[%c0_2, %c0_3] : memref<8x512xf32, #tpu.memory_space<vmem>>, vector<8x512xf32>
    %cst = arith.constant 5.000000e-01 : f32
    %7 = vector.broadcast %cst : f32 to vector<8x512xf32>
    %8 = arith.mulf %7, %5 : vector<8x512xf32>
    %9 = math.tanh %8 : vector<8x512xf32>
    %cst_4 = arith.constant 5.000000e-01 : f32
    %10 = vector.broadcast %cst_4 : f32 to vector<8x512xf32>
    %11 = arith.mulf %10, %9 : vector<8x512xf32>
    %cst_5 = arith.constant 5.000000e-01 : f32
    %12 = vector.broadcast %cst_5 : f32 to vector<8x512xf32>
    %13 = arith.addf %11, %12 : vector<8x512xf32>
    %cst_6 = arith.constant 9.99999993E-9 : f32
    %14 = vector.broadcast %cst_6 : f32 to vector<8x512xf32>
    %15 = arith.addf %13, %14 : vector<8x512xf32>
    %cst_7 = arith.constant 1.000000e+00 : f32
    %16 = vector.broadcast %cst_7 : f32 to vector<8x512xf32>
    %17 = arith.subf %16, %13 : vector<8x512xf32>
    %cst_8 = arith.constant 9.99999993E-9 : f32
    %18 = vector.broadcast %cst_8 : f32 to vector<8x512xf32>
    %19 = arith.addf %17, %18 : vector<8x512xf32>
    %20 = math.log %15 : vector<8x512xf32>
    %21 = math.log %19 : vector<8x512xf32>
    %cst_9 = arith.constant 1.000000e+00 : f32
    %22 = vector.broadcast %cst_9 : f32 to vector<8x512xf32>
    %cst_10 = arith.constant 1.000000e+00 : f32
    %23 = vector.broadcast %cst_10 : f32 to vector<8x512xf32>
    %24 = arith.mulf %22, %19 : vector<8x512xf32>
    %25 = arith.mulf %23, %15 : vector<8x512xf32>
    %26 = arith.mulf %24, %19 : vector<8x512xf32>
    %27 = arith.mulf %25, %15 : vector<8x512xf32>
    %cst_11 = arith.constant -2.500000e-01 : f32
    %28 = vector.broadcast %cst_11 : f32 to vector<8x512xf32>
    %29 = arith.mulf %28, %26 : vector<8x512xf32>
    %30 = arith.mulf %29, %6 : vector<8x512xf32>
    %31 = arith.mulf %30, %20 : vector<8x512xf32>
    %cst_12 = arith.constant 7.500000e-01 : f32
    %32 = vector.broadcast %cst_12 : f32 to vector<8x512xf32>
    %33 = arith.mulf %32, %27 : vector<8x512xf32>
    %cst_13 = arith.constant 1.000000e+00 : f32
    %34 = vector.broadcast %cst_13 : f32 to vector<8x512xf32>
    %35 = arith.subf %34, %6 : vector<8x512xf32>
    %36 = arith.mulf %33, %35 : vector<8x512xf32>
    %37 = arith.mulf %36, %21 : vector<8x512xf32>
    %38 = arith.subf %31, %37 : vector<8x512xf32>
    %c0_i32_14 = arith.constant 0 : i32
    %39 = arith.cmpi slt, %1, %c0_i32_14 : i32
    %40 = arith.extui %39 : i1 to i32
    %c0_i32_15 = arith.constant 0 : i32
    %41 = arith.cmpi ne, %40, %c0_i32_15 : i32
    scf.if %41 {
      %c0_20 = arith.constant 0 : index
      %c0_21 = arith.constant 0 : index
      %48 = vector.load %arg5[%c0_20, %c0_21] : memref<8x512xf32, #tpu.memory_space<vmem>>, vector<8x512xf32>
      %49 = vector.shape_cast %38 : vector<8x512xf32> to vector<1x8x512xf32>
      %cst_22 = arith.constant dense<0.000000e+00> : vector<8x512xf32>
      %50 = vector.multi_reduction <add>, %49, %cst_22 [0] : vector<1x8x512xf32> to vector<8x512xf32>
      %51 = arith.addf %48, %50 : vector<8x512xf32>
      %c0_23 = arith.constant 0 : index
      %c0_24 = arith.constant 0 : index
      %52 = vector.load %arg5[%c0_23, %c0_24] : memref<8x512xf32, #tpu.memory_space<vmem>>, vector<8x512xf32>
      tpu.vector_store %arg5[%c0_23, %c0_24], %51 {strides = array<i32>} : memref<8x512xf32, #tpu.memory_space<vmem>>, vector<8x512xf32>,
    } else {
    }
    %c0_i32_16 = arith.constant 0 : i32
    %42 = arith.cmpi eq, %1, %c0_i32_16 : i32
    %43 = arith.extui %42 : i1 to i32
    %c0_i32_17 = arith.constant 0 : i32
    %44 = arith.cmpi ne, %43, %c0_i32_17 : i32
    scf.if %44 {
      %48 = tpu.iota {dimensions = array<i32: 0>} : vector<8x512xi32>
      %c8_i32 = arith.constant 8 : i32
      %49 = arith.muli %1, %c8_i32 : i32
      %50 = vector.broadcast %49 : i32 to vector<8x512xi32>
      %51 = arith.addi %50, %48 : vector<8x512xi32>
      %c1_i32_20 = arith.constant 1 : i32
      %52 = vector.broadcast %c1_i32_20 : i32 to vector<8x512xi32>
      %53 = arith.cmpi slt, %51, %52 : vector<8x512xi32>
      %cst_21 = arith.constant 0.000000e+00 : f32
      %54 = vector.broadcast %cst_21 : f32 to vector<8x512xf32>
      %55 = arith.select %53, %38, %54 : vector<8x512xi1>, vector<8x512xf32>
      %c0_22 = arith.constant 0 : index
      %c0_23 = arith.constant 0 : index
      %56 = vector.load %arg5[%c0_22, %c0_23] : memref<8x512xf32, #tpu.memory_space<vmem>>, vector<8x512xf32>
      %57 = vector.shape_cast %55 : vector<8x512xf32> to vector<1x8x512xf32>
      %cst_24 = arith.constant dense<0.000000e+00> : vector<8x512xf32>
      %58 = vector.multi_reduction <add>, %57, %cst_24 [0] : vector<1x8x512xf32> to vector<8x512xf32>
      %59 = arith.addf %56, %58 : vector<8x512xf32>
      %c0_25 = arith.constant 0 : index
      %c0_26 = arith.constant 0 : index
      %60 = vector.load %arg5[%c0_25, %c0_26] : memref<8x512xf32, #tpu.memory_space<vmem>>, vector<8x512xf32>
      tpu.vector_store %arg5[%c0_25, %c0_26], %59 {strides = array<i32>} : memref<8x512xf32, #tpu.memory_space<vmem>>, vector<8x512xf32>,
    } else {
    }
    %c0_i32_18 = arith.constant 0 : i32
    %45 = arith.cmpi eq, %arg1, %c0_i32_18 : i32
    %46 = arith.extui %45 : i1 to i32
    %c0_i32_19 = arith.constant 0 : i32
    %47 = arith.cmpi ne, %46, %c0_i32_19 : i32
    scf.if %47 {
      %c0_20 = arith.constant 0 : index
      %c0_21 = arith.constant 0 : index
      %48 = vector.load %arg5[%c0_20, %c0_21] : memref<8x512xf32, #tpu.memory_space<vmem>>, vector<8x512xf32>
      %49 = vector.shape_cast %48 : vector<8x512xf32> to vector<1x8x512xf32>
      %cst_22 = arith.constant dense<0.000000e+00> : vector<1xf32>
      %50 = vector.multi_reduction <add>, %49, %cst_22 [1, 2] : vector<1x8x512xf32> to vector<1xf32>
      %51 = vector.shape_cast %50 : vector<1xf32> to vector<1x1x1xf32>
      %52 = vector.extract %51[0, 0, 0] : f32 from vector<1x1x1xf32>
      %53 = vector.broadcast %52 : f32 to vector<1x8x128xf32>
      %c0_23 = arith.constant 0 : index
      %c0_24 = arith.constant 0 : index
      %c0_25 = arith.constant 0 : index
      %54 = vector.load %arg4[%c0_23, %c0_24, %c0_25] : memref<1x8x128xf32, #tpu.memory_space<vmem>>, vector<1x8x128xf32>
      tpu.vector_store %arg4[%c0_23, %c0_24, %c0_25], %53 {strides = array<i32>} : memref<1x8x128xf32, #tpu.memory_space<vmem>>, vector<1x8x128xf32>,
    } else {
    }
    return
  }
  func.func @transform_0(%arg0: i32, %arg1: i32) -> (i32, i32) {
    %c1_i32 = arith.constant 1 : i32
    %0 = arith.muli %arg0, %c1_i32 : i32
    %1 = arith.addi %0, %arg1 : i32
    %c0_i32 = arith.constant 0 : i32
    %2 = arith.minsi %1, %c0_i32 : i32
    %c0_i32_0 = arith.constant 0 : i32
    %c0_i32_1 = arith.constant 0 : i32
    return %2, %c0_i32_0 : i32, i32
  }
  func.func @transform_1(%arg0: i32, %arg1: i32) -> (i32, i32) {
    %c1_i32 = arith.constant 1 : i32
    %0 = arith.muli %arg0, %c1_i32 : i32
    %1 = arith.addi %0, %arg1 : i32
    %c0_i32 = arith.constant 0 : i32
    %2 = arith.minsi %1, %c0_i32 : i32
    %c0_i32_0 = arith.constant 0 : i32
    %c0_i32_1 = arith.constant 0 : i32
    return %2, %c0_i32_0 : i32, i32
  }
  func.func @transform_2(%arg0: i32, %arg1: i32) -> (i32, i32, i32) {
    %c0_i32 = arith.constant 0 : i32
    %c0_i32_0 = arith.constant 0 : i32
    %c0_i32_1 = arith.constant 0 : i32
    return %arg0, %c0_i32, %c0_i32_0 : i32, i32, i32
  }
}

</mosaic_0001>

<llo_original>
// kernel: tpu_custom_call.1
$region0: #{tpu_custom_call.1}
  #allocation0 [shape = 'u32[]', space=smem, size = 0x4, offset = 0x4, fixed_abs, tag = 'smem constant byte address 0x4 - core index']
  #allocation1 [shape = 'u32[144,128]{1,0:T(1,128)}', space=vmem, size = 0x12000, scoped, tag = 'internal scratch']
  #allocation2 [shape = 'f32[8,512]{1,0:T(8,128)}', space=vmem, size = 0x4000, scoped, tag = 'scratch operand']
  %s0 = inlined_call_operand.hbm [shape: f32[1,512], index: 0, kind: input, shape index: {}]
  %s1 = inlined_call_operand.hbm [shape: f32[1,512], index: 1, kind: input, shape index: {}]
  %s2 = inlined_call_operand.hbm [shape: f32[2,8,128], index: 2, kind: output, shape index: {}]
  %s3 = sld [smem:[#allocation0]]
  $region65: #{tpu_custom_call.1} parent=0
    _
  %s5 = ssub.s32 1, %s3
  %s6 = scalar_select 0, %s5, %s3
  $region1: #{tpu_custom_call.1} parent=0
    #allocation3 [shape = 'u8[32768]{0}', space=vmem, size = 0x8000, scoped, tag = 'input window, operand 0']
    #allocation4 [shape = 's32[2]{0}', space=sflag, size = 0x8, scoped, tag = 'scoped memory for tpu_custom_call.1']
    #allocation5 [shape = 's32[2]{0}', space=sflag, size = 0x8, scoped, tag = 'scoped memory for tpu_custom_call.1']
    #allocation6 [shape = 'u8[32768]{0}', space=vmem, size = 0x8000, scoped, tag = 'input window, operand 1']
    #allocation7 [shape = 's32[2]{0}', space=sflag, size = 0x8, scoped, tag = 'scoped memory for tpu_custom_call.1']
    #allocation8 [shape = 'u8[8192]{0}', space=vmem, size = 0x2000, scoped, tag = 'output window, operand 0']
    %7 = vsyncpa [#allocation4], 0
    %s8 = scalar_lea.sflag [#allocation4], 1
    %9 = vsyncpa %s8, 0
    %10 = vsyncpa [#allocation7], 0
    %s11 = scalar_lea.sflag [#allocation7], 1
    %12 = vsyncpa %s11, 0
    %13 = vsyncpa [#allocation5], 0
    %s14 = scalar_lea.sflag [#allocation5], 1
    %15 = vsyncpa %s14, 0
    loop: start=0, step=1, limit=4
    $region2: #{tpu_custom_call.1} parent=1 // loop_pre_header
      _
    $region3: #{tpu_custom_call.1} parent=1 // loop_header
      %s17 = sphi 0, %s21
      %p18 = scmp.ge.s32.totalorder %s17, 4
      %s24 = sphi 0, %s36
      %s25 = sphi 0, %s32
      %s26 = sphi 0, %s24
      %s27 = sphi 0, %s25
      %s28 = sphi 0, %s26
      %s29 = sphi 0, %s27
      %s45 = sphi 0, %s47
      %s48 = sphi 0, %s45
      %s49 = sphi 0, %s48
      %s65 = sphi 0, %s49
      %s77 = sphi 0, %s79
      %s80 = sphi 0, %s77
      %s81 = sphi 0, %s80
      %s97 = sphi 0, %s81
      %s103 = sphi 0, %s105
      %s106 = sphi 0, %s103
      %s107 = sphi 0, %s106
      %s123 = sphi 0, %s107
    $region4: #{tpu_custom_call.1} parent=1 // loop_header_branch
      %20 = sbr.rel (%p18) target = $region8
    $region5: #{tpu_custom_call.1} parent=1 // loop_body
      %s22 = ssub.s32 %s17, 1
      %s23 = ssub.s32 %s17, 2
      %s30 = sadd.s32 1, %s25
      %p31 = scmp.ge.s32.totalorder %s30, 1
      %s32 = scalar_select %p31, 0, %s30
      %s33 = sadd.s32 1, %s24
      %s34 = scalar_select %p31, %s33, %s24
      %p35 = scmp.ge.s32.totalorder %s34, 2
      %s36 = scalar_select %p35, 0, %s34
      %s37 = sadd.s32 %s24, %s25
      %p38 = scmp.lt.s32.totalorder %s37, 0
      %s39 = scalar_select %p38, %s37, 0
      %s40 = sadd.s32 %s36, %s32
      %p41 = scmp.lt.s32.totalorder %s40, 0
      %s42 = scalar_select %p41, %s40, 0
      %s43 = ssub.s32 %s39, %s42
      %p44 = scmp.eq.s32.totalorder %s43, 0
      %s46 = sadd.s32 %s45, 1
      %s47 = scalar_select %p44, %s45, %s46
      %p50 = pneg %p44
      %p51 = scmp.eq.s32.totalorder %s17, 1
      %p52 = por %p50, %p51
      %p53 = scmp.ne.s32.totalorder %s45, %s48
      %p54 = scmp.eq.s32.totalorder %s17, 0
      %p55 = por %p53, %p54
      %p56 = scmp.ne.s32.totalorder %s45, %s48
      %p57 = scmp.eq.s32.totalorder %s22, 1
      %p58 = por %p56, %p57
      %p59 = scmp.ne.s32.totalorder %s48, %s49
      %p60 = scmp.eq.s32.totalorder %s22, 0
      %p61 = por %p59, %p60
      %p62 = scmp.ne.s32.totalorder %s48, %s49
      %p63 = scmp.eq.s32.totalorder %s23, 1
      %p64 = por %p62, %p63
      %p66 = scmp.ne.s32.totalorder %s49, %s65
      %p67 = scmp.eq.s32.totalorder %s23, 0
      %p68 = por %p66, %p67
      %s69 = sadd.s32 %s24, %s25
      %p70 = scmp.lt.s32.totalorder %s69, 0
      %s71 = scalar_select %p70, %s69, 0
      %s72 = sadd.s32 %s36, %s32
      %p73 = scmp.lt.s32.totalorder %s72, 0
      %s74 = scalar_select %p73, %s72, 0
      %s75 = ssub.s32 %s71, %s74
      %p76 = scmp.eq.s32.totalorder %s75, 0
      %s78 = sadd.s32 %s77, 1
      %s79 = scalar_select %p76, %s77, %s78
      %p82 = pneg %p76
      %p83 = scmp.eq.s32.totalorder %s17, 1
      %p84 = por %p82, %p83
      %p85 = scmp.ne.s32.totalorder %s77, %s80
      %p86 = scmp.eq.s32.totalorder %s17, 0
      %p87 = por %p85, %p86
      %p88 = scmp.ne.s32.totalorder %s77, %s80
      %p89 = scmp.eq.s32.totalorder %s22, 1
      %p90 = por %p88, %p89
      %p91 = scmp.ne.s32.totalorder %s80, %s81
      %p92 = scmp.eq.s32.totalorder %s22, 0
      %p93 = por %p91, %p92
      %p94 = scmp.ne.s32.totalorder %s80, %s81
      %p95 = scmp.eq.s32.totalorder %s23, 1
      %p96 = por %p94, %p95
      %p98 = scmp.ne.s32.totalorder %s81, %s97
      %p99 = scmp.eq.s32.totalorder %s23, 0
      %p100 = por %p98, %p99
      %s101 = ssub.s32 %s24, %s36
      %p102 = scmp.eq.s32.totalorder %s101, 0
      %s104 = sadd.s32 %s103, 1
      %s105 = scalar_select %p102, %s103, %s104
      %p108 = pneg %p102
      %p109 = scmp.eq.s32.totalorder %s17, 1
      %p110 = por %p108, %p109
      %p111 = scmp.ne.s32.totalorder %s103, %s106
      %p112 = scmp.eq.s32.totalorder %s17, 0
      %p113 = por %p111, %p112
      %p114 = scmp.ne.s32.totalorder %s103, %s106
      %p115 = scmp.eq.s32.totalorder %s22, 1
      %p116 = por %p114, %p115
      %p117 = scmp.ne.s32.totalorder %s106, %s107
      %p118 = scmp.eq.s32.totalorder %s22, 0
      %p119 = por %p117, %p118
      %p120 = scmp.ne.s32.totalorder %s106, %s107
      %p121 = scmp.eq.s32.totalorder %s23, 1
      %p122 = por %p120, %p121
      %p124 = scmp.ne.s32.totalorder %s107, %s123
      %p125 = scmp.eq.s32.totalorder %s23, 0
      %p126 = por %p124, %p125
      %p127 = scmp.le.s32.totalorder 1, %s17
      %p128 = scmp.lt.s32.totalorder %s17, 3
      %p129 = pnand %p127, %p128
      %p130 = pneg %p129
      // Predicated region
      $region9: #{tpu_custom_call.1} parent=5 // pred_check
        _
      $region10: #{tpu_custom_call.1} parent=5 // pred_check_branch
        %132 = sbr.rel (%p129) target = $region12
      $region11: #{tpu_custom_call.1} parent=5 // pred_region
        %s133 = ssub.s32 %s17, 1
      $region12: #{tpu_custom_call.1} parent=5 // pred_fallthru
        _
      %p134 = scmp.lt.s32.totalorder %s17, 2
      // Predicated region
      $region13: #{tpu_custom_call.1} parent=5 // pred_check
        %p135 = pneg %p134
      $region14: #{tpu_custom_call.1} parent=5 // pred_check_branch
        %137 = sbr.rel (%p135) target = $region16
      $region15: #{tpu_custom_call.1} parent=5 // pred_region
        // Predicated region
        $region17: #{tpu_custom_call.1} parent=15 // pred_check
          %p138 = pneg %p55
        $region18: #{tpu_custom_call.1} parent=15 // pred_check_branch
          %140 = sbr.rel (%p138) target = $region20
        $region19: #{tpu_custom_call.1} parent=15 // pred_region
          %s141 = sand.u32 %s45, 1
          %s142 = scalar_lea.sflag [#allocation4], %s141
          %s143 = sand.u32 %s45, 1
          %s144 = smul.addr %s143, 32
          %s145 = scalar_lea.vmem [#allocation3], %s144
          %s146 = sadd.s32 %s24, %s25
          %p147 = scmp.lt.s32.totalorder %s146, 0
          %s148 = scalar_select %p147, %s146, 0
          %s149 = smul.u32 8, %s148
          %s150 = ssub.s32 1, %s149
          %s151 = smul.u32 16, %s150
          %s152 = smul.u32 %s151, 4
          %s154 = ssub.s32 512, %s152
          %155 = vsyncadd %s142, %s154
          %p156 = scmp.ne.s32.totalorder 0, %s152
          %s157 = smul.addr %s149, 4
          %s158 = smul.addr %s157, 16
          %s159 = scalar_lea.hbm %s0, %s158
          %s160 = smul.u32 4, %s150
          %s161 = sshll.u32 %s145, 4
          %s162 = int_to_ptr.vmem [resolvable:$true] %s161
          %s163 = sshll.u32 %s160, 4
          %167 = dma.hbm_to_vmem [thread:$0]  (%p156), %s159, %s163, %s162, %s142, 64, 64, 4
        $region20: #{tpu_custom_call.1} parent=15 // pred_fallthru
          _
        // Predicated region
        $region21: #{tpu_custom_call.1} parent=15 // pred_check
          %p168 = pneg %p87
        $region22: #{tpu_custom_call.1} parent=15 // pred_check_branch
          %170 = sbr.rel (%p168) target = $region24
        $region23: #{tpu_custom_call.1} parent=15 // pred_region
          %s171 = sand.u32 %s77, 1
          %s172 = scalar_lea.sflag [#allocation7], %s171
          %s173 = sand.u32 %s77, 1
          %s174 = smul.addr %s173, 32
          %s175 = scalar_lea.vmem [#allocation6], %s174
          %s176 = sadd.s32 %s24, %s25
          %p177 = scmp.lt.s32.totalorder %s176, 0
          %s178 = scalar_select %p177, %s176, 0
          %s179 = smul.u32 8, %s178
          %s180 = ssub.s32 1, %s179
          %s181 = smul.u32 16, %s180
          %s182 = smul.u32 %s181, 4
          %s184 = ssub.s32 512, %s182
          %185 = vsyncadd %s172, %s184
          %p186 = scmp.ne.s32.totalorder 0, %s182
          %s187 = smul.addr %s179, 4
          %s188 = smul.addr %s187, 16
          %s189 = scalar_lea.hbm %s1, %s188
          %s190 = smul.u32 4, %s180
          %s191 = sshll.u32 %s175, 4
          %s192 = int_to_ptr.vmem [resolvable:$true] %s191
          %s193 = sshll.u32 %s190, 4
          %197 = dma.hbm_to_vmem [thread:$0]  (%p186), %s189, %s193, %s192, %s172, 64, 64, 4
        $region24: #{tpu_custom_call.1} parent=15 // pred_fallthru
          _
      $region16: #{tpu_custom_call.1} parent=5 // pred_fallthru
        _
      %p198 = scmp.le.s32.totalorder 1, %s17
      %p199 = scmp.lt.s32.totalorder %s17, 3
      %p200 = pnand %p198, %p199
      %p201 = pneg %p200
      // Predicated region
      $region25: #{tpu_custom_call.1} parent=5 // pred_check
        _
      $region26: #{tpu_custom_call.1} parent=5 // pred_check_branch
        %203 = sbr.rel (%p200) target = $region28
      $region27: #{tpu_custom_call.1} parent=5 // pred_region
        %s204 = ssub.s32 %s17, 1
        %s205 = sand.u32 %s48, 1
        %s206 = scalar_lea.sflag [#allocation4], %s205
        %s207 = sand.u32 %s48, 1
        %s208 = smul.addr %s207, 32
        %s209 = scalar_lea.vmem [#allocation3], %s208
        // Predicated region
        $region29: #{tpu_custom_call.1} parent=27 // pred_check
          %p210 = pneg %p61
        $region30: #{tpu_custom_call.1} parent=27 // pred_check_branch
          %212 = sbr.rel (%p210) target = $region32
        $region31: #{tpu_custom_call.1} parent=27 // pred_region
          %213 = dma.done %s206, 512
        $region32: #{tpu_custom_call.1} parent=27 // pred_fallthru
          _
        %s214 = sand.u32 %s80, 1
        %s215 = scalar_lea.sflag [#allocation7], %s214
        %s216 = sand.u32 %s80, 1
        %s217 = smul.addr %s216, 32
        %s218 = scalar_lea.vmem [#allocation6], %s217
        // Predicated region
        $region33: #{tpu_custom_call.1} parent=27 // pred_check
          %p219 = pneg %p93
        $region34: #{tpu_custom_call.1} parent=27 // pred_check_branch
          %221 = sbr.rel (%p219) target = $region36
        $region35: #{tpu_custom_call.1} parent=27 // pred_region
          %222 = dma.done %s215, 512
        $region36: #{tpu_custom_call.1} parent=27 // pred_fallthru
          _
        %s223 = sand.u32 %s48, 1
        %s224 = scalar_lea.sflag [#allocation4], %s223
        %s225 = sand.u32 %s48, 1
        %s226 = smul.addr %s225, 32
        %s227 = scalar_lea.vmem [#allocation3], %s226
        %p228 = pneg %p61
        %p229 = pneg %p58
        %s230 = sand.u32 %s80, 1
        %s231 = scalar_lea.sflag [#allocation7], %s230
        %s232 = sand.u32 %s80, 1
        %s233 = smul.addr %s232, 32
        %s234 = scalar_lea.vmem [#allocation6], %s233
        %p235 = pneg %p93
        %p236 = pneg %p90
        %p237 = pneg %p119
        %p238 = pneg %p116
        %s239 = sand.u32 %s106, 1
        %s240 = scalar_lea.sflag [#allocation5], %s239
        %s241 = sand.u32 %s106, 1
        %s242 = smul.addr %s241, 8
        %s243 = scalar_lea.vmem [#allocation8], %s242
        %s244 = sadd.s32 %s26, %s27
        %p245 = scmp.lt.s32.totalorder %s244, 0
        %s246 = scalar_select %p245, %s244, 0
        %s247 = smul.u32 8, %s246
        %s248 = ssub.s32 1, %s247
        %s249 = smul.u32 16, %s248
        %s250 = smul.u32 %s249, 4
        %s251 = sadd.s32 %s26, %s27
        %p252 = scmp.lt.s32.totalorder %s251, 0
        %s253 = scalar_select %p252, %s251, 0
        %s254 = smul.u32 8, %s253
        %s255 = ssub.s32 1, %s254
        %s256 = smul.u32 16, %s255
        %s257 = smul.u32 %s256, 4
        %s258 = sadd.s32 %s26, %s27
        %p259 = scmp.eq.s32.totalorder %s27, 0
        // Predicated region
        $region37: #{tpu_custom_call.1} parent=27 // pred_check
          %p260 = pneg %p259
        $region38: #{tpu_custom_call.1} parent=27 // pred_check_branch
          %262 = sbr.rel (%p260) target = $region40
        $region39: #{tpu_custom_call.1} parent=27 // pred_region
          %263 = vst [vmem:[#allocation2] sm:$0xff] 0.0
          %264 = vst [vmem:[#allocation2 + $0x8] sm:$0xff] 0.0
          %265 = vst [vmem:[#allocation2 + $0x10] sm:$0xff] 0.0
          %266 = vst [vmem:[#allocation2 + $0x18] sm:$0xff] 0.0
        $region40: #{tpu_custom_call.1} parent=27 // pred_fallthru
          _
        %v267 = vld [vmem:[%s209] sm:$0xf]
        %v268 = vld [vmem:[%s209 + $0x4] sm:$0xf]
        %v269 = vld [vmem:[%s209 + $0x8] sm:$0xf]
        %v270 = vld [vmem:[%s209 + $0xc] sm:$0xf]
        %v271 = vld [vmem:[%s209 + $0x10] sm:$0xf]
        %v272 = vld [vmem:[%s209 + $0x14] sm:$0xf]
        %v273 = vld [vmem:[%s209 + $0x18] sm:$0xf]
        %v274 = vld [vmem:[%s209 + $0x1c] sm:$0xf]
        %v275 = vld [vmem:[%s218] sm:$0xf]
        %v276 = vld [vmem:[%s218 + $0x4] sm:$0xf]
        %v277 = vld [vmem:[%s218 + $0x8] sm:$0xf]
        %v278 = vld [vmem:[%s218 + $0xc] sm:$0xf]
        %v279 = vld [vmem:[%s218 + $0x10] sm:$0xf]
        %v280 = vld [vmem:[%s218 + $0x14] sm:$0xf]
        %v281 = vld [vmem:[%s218 + $0x18] sm:$0xf]
        %v282 = vld [vmem:[%s218 + $0x1c] sm:$0xf]
        %v283 = vmul.f32 %v267, 0.5
        %v284 = vmul.f32 %v268, 0.5
        %v285 = vmul.f32 %v269, 0.5
        %v286 = vmul.f32 %v270, 0.5
        %v287 = vmul.f32 %v271, 0.5
        %v288 = vmul.f32 %v272, 0.5
        %v289 = vmul.f32 %v273, 0.5
        %v290 = vmul.f32 %v274, 0.5
        %v291 = vtanh.pop %v283
        %v292 = vtanh.pop %v284
        %v293 = vtanh.pop %v285
        %v294 = vtanh.pop %v286
        %v295 = vtanh.pop %v287
        %v296 = vtanh.pop %v288
        %v297 = vtanh.pop %v289
        %v298 = vtanh.pop %v290
        %v299 = vmul.f32 %v291, 0.5
        %v300 = vmul.f32 %v292, 0.5
        %v301 = vmul.f32 %v293, 0.5
        %v302 = vmul.f32 %v294, 0.5
        %v303 = vmul.f32 %v295, 0.5
        %v304 = vmul.f32 %v296, 0.5
        %v305 = vmul.f32 %v297, 0.5
        %v306 = vmul.f32 %v298, 0.5
        %v307 = vadd.f32 %v299, 0.5
        %v308 = vadd.f32 %v300, 0.5
        %v309 = vadd.f32 %v301, 0.5
        %v310 = vadd.f32 %v302, 0.5
        %v311 = vadd.f32 %v303, 0.5
        %v312 = vadd.f32 %v304, 0.5
        %v313 = vadd.f32 %v305, 0.5
        %v314 = vadd.f32 %v306, 0.5
        %v315 = vadd.f32 %v307, 1e-08
        %v316 = vadd.f32 %v308, 1e-08
        %v317 = vadd.f32 %v309, 1e-08
        %v318 = vadd.f32 %v310, 1e-08
        %v319 = vadd.f32 %v311, 1e-08
        %v320 = vadd.f32 %v312, 1e-08
        %v321 = vadd.f32 %v313, 1e-08
        %v322 = vadd.f32 %v314, 1e-08
        %v323 = vsub.f32 1.0, %v307
        %v324 = vsub.f32 1.0, %v308
        %v325 = vsub.f32 1.0, %v309
        %v326 = vsub.f32 1.0, %v310
        %v327 = vsub.f32 1.0, %v311
        %v328 = vsub.f32 1.0, %v312
        %v329 = vsub.f32 1.0, %v313
        %v330 = vsub.f32 1.0, %v314
        %v331 = vadd.f32 %v323, 1e-08
        %v332 = vadd.f32 %v324, 1e-08
        %v333 = vadd.f32 %v325, 1e-08
        %v334 = vadd.f32 %v326, 1e-08
        %v335 = vadd.f32 %v327, 1e-08
        %v336 = vadd.f32 %v328, 1e-08
        %v337 = vadd.f32 %v329, 1e-08
        %v338 = vadd.f32 %v330, 1e-08
        %v339 = vlog2.pop %v315
        %v340 = vmul.f32 %v339, 0.6931472
        %v341 = vlog2.pop %v316
        %v342 = vmul.f32 %v341, 0.6931472
        %v343 = vlog2.pop %v317
        %v344 = vmul.f32 %v343, 0.6931472
        %v345 = vlog2.pop %v318
        %v346 = vmul.f32 %v345, 0.6931472
        %v347 = vlog2.pop %v319
        %v348 = vmul.f32 %v347, 0.6931472
        %v349 = vlog2.pop %v320
        %v350 = vmul.f32 %v349, 0.6931472
        %v351 = vlog2.pop %v321
        %v352 = vmul.f32 %v351, 0.6931472
        %v353 = vlog2.pop %v322
        %v354 = vmul.f32 %v353, 0.6931472
        %v355 = vlog2.pop %v331
        %v356 = vmul.f32 %v355, 0.6931472
        %v357 = vlog2.pop %v332
        %v358 = vmul.f32 %v357, 0.6931472
        %v359 = vlog2.pop %v333
        %v360 = vmul.f32 %v359, 0.6931472
        %v361 = vlog2.pop %v334
        %v362 = vmul.f32 %v361, 0.6931472
        %v363 = vlog2.pop %v335
        %v364 = vmul.f32 %v363, 0.6931472
        %v365 = vlog2.pop %v336
        %v366 = vmul.f32 %v365, 0.6931472
        %v367 = vlog2.pop %v337
        %v368 = vmul.f32 %v367, 0.6931472
        %v369 = vlog2.pop %v338
        %v370 = vmul.f32 %v369, 0.6931472
        %v371 = vmul.f32 %v331, %v331
        %v372 = vmul.f32 %v332, %v332
        %v373 = vmul.f32 %v333, %v333
        %v374 = vmul.f32 %v334, %v334
        %v375 = vmul.f32 %v335, %v335
        %v376 = vmul.f32 %v336, %v336
        %v377 = vmul.f32 %v337, %v337
        %v378 = vmul.f32 %v338, %v338
        %v379 = vmul.f32 %v315, %v315
        %v380 = vmul.f32 %v316, %v316
        %v381 = vmul.f32 %v317, %v317
        %v382 = vmul.f32 %v318, %v318
        %v383 = vmul.f32 %v319, %v319
        %v384 = vmul.f32 %v320, %v320
        %v385 = vmul.f32 %v321, %v321
        %v386 = vmul.f32 %v322, %v322
        %v387 = vmul.f32 %v371, -0.25
        %v388 = vmul.f32 %v372, -0.25
        %v389 = vmul.f32 %v373, -0.25
        %v390 = vmul.f32 %v374, -0.25
        %v391 = vmul.f32 %v375, -0.25
        %v392 = vmul.f32 %v376, -0.25
        %v393 = vmul.f32 %v377, -0.25
        %v394 = vmul.f32 %v378, -0.25
        %v395 = vmul.f32 %v387, %v275
        %v396 = vmul.f32 %v388, %v276
        %v397 = vmul.f32 %v389, %v277
        %v398 = vmul.f32 %v390, %v278
        %v399 = vmul.f32 %v391, %v279
        %v400 = vmul.f32 %v392, %v280
        %v401 = vmul.f32 %v393, %v281
        %v402 = vmul.f32 %v394, %v282
        %v403 = vmul.f32 %v395, %v340
        %v404 = vmul.f32 %v396, %v342
        %v405 = vmul.f32 %v397, %v344
        %v406 = vmul.f32 %v398, %v346
        %v407 = vmul.f32 %v399, %v348
        %v408 = vmul.f32 %v400, %v350
        %v409 = vmul.f32 %v401, %v352
        %v410 = vmul.f32 %v402, %v354
        %v411 = vmul.f32 %v379, 0.75
        %v412 = vmul.f32 %v380, 0.75
        %v413 = vmul.f32 %v381, 0.75
        %v414 = vmul.f32 %v382, 0.75
        %v415 = vmul.f32 %v383, 0.75
        %v416 = vmul.f32 %v384, 0.75
        %v417 = vmul.f32 %v385, 0.75
        %v418 = vmul.f32 %v386, 0.75
        %v419 = vsub.f32 1.0, %v275
        %v420 = vsub.f32 1.0, %v276
        %v421 = vsub.f32 1.0, %v277
        %v422 = vsub.f32 1.0, %v278
        %v423 = vsub.f32 1.0, %v279
        %v424 = vsub.f32 1.0, %v280
        %v425 = vsub.f32 1.0, %v281
        %v426 = vsub.f32 1.0, %v282
        %v427 = vmul.f32 %v411, %v419
        %v428 = vmul.f32 %v412, %v420
        %v429 = vmul.f32 %v413, %v421
        %v430 = vmul.f32 %v414, %v422
        %v431 = vmul.f32 %v415, %v423
        %v432 = vmul.f32 %v416, %v424
        %v433 = vmul.f32 %v417, %v425
        %v434 = vmul.f32 %v418, %v426
        %v435 = vmul.f32 %v427, %v356
        %v436 = vmul.f32 %v428, %v358
        %v437 = vmul.f32 %v429, %v360
        %v438 = vmul.f32 %v430, %v362
        %v439 = vmul.f32 %v431, %v364
        %v440 = vmul.f32 %v432, %v366
        %v441 = vmul.f32 %v433, %v368
        %v442 = vmul.f32 %v434, %v370
        %v443 = vsub.f32 %v403, %v435
        %v444 = vsub.f32 %v404, %v436
        %v445 = vsub.f32 %v405, %v437
        %v446 = vsub.f32 %v406, %v438
        %v447 = vsub.f32 %v407, %v439
        %v448 = vsub.f32 %v408, %v440
        %v449 = vsub.f32 %v409, %v441
        %v450 = vsub.f32 %v410, %v442
        %p451 = scmp.lt.s32.totalorder %s258, 0
        // Predicated region
        $region41: #{tpu_custom_call.1} parent=27 // pred_check
          %p452 = pneg %p451
        $region42: #{tpu_custom_call.1} parent=27 // pred_check_branch
          %454 = sbr.rel (%p452) target = $region44
        $region43: #{tpu_custom_call.1} parent=27 // pred_region
          %v455 = vld [vmem:[#allocation2] sm:$0xff]
          %v456 = vld [vmem:[#allocation2 + $0x8] sm:$0xff]
          %v457 = vld [vmem:[#allocation2 + $0x10] sm:$0xff]
          %v458 = vld [vmem:[#allocation2 + $0x18] sm:$0xff]
          %v459 = vadd.f32 %v443, 0.0
          %v460 = vadd.f32 %v444, 0.0
          %v461 = vadd.f32 %v445, 0.0
          %v462 = vadd.f32 %v446, 0.0
          %v463 = vadd.f32 %v447, 0.0
          %v464 = vadd.f32 %v448, 0.0
          %v465 = vadd.f32 %v449, 0.0
          %v466 = vadd.f32 %v450, 0.0
          %v475 = vcombine.low %v459, %v460
          %v476 = vcombine.low %v461, %v462
          %v477 = vcombine.low %v463, %v464
          %v478 = vcombine.low %v465, %v466
          %v480 = vunpack.c.l.s4 1966171168
          %v481 = vunpack.c.0.s8 %v480
          %v482 = vlaneseq
          %v483 = vshrl.u32 %v482, 7
          %v484 = vsub.s32 %v481, %v483
          %v485 = vrot.slane %v475, %v484
          %v487 = vunpack.c.l.s4 1966171168
          %v488 = vunpack.c.0.s8 %v487
          %v489 = vlaneseq
          %v490 = vshrl.u32 %v489, 7
          %v491 = vsub.s32 %v488, %v490
          %v492 = vrot.slane %v476, %v491
          %v494 = vunpack.c.l.s4 1966171168
          %v495 = vunpack.c.0.s8 %v494
          %v496 = vlaneseq
          %v497 = vshrl.u32 %v496, 7
          %v498 = vsub.s32 %v495, %v497
          %v499 = vrot.slane %v477, %v498
          %v501 = vunpack.c.l.s4 1966171168
          %v502 = vunpack.c.0.s8 %v501
          %v503 = vlaneseq
          %v504 = vshrl.u32 %v503, 7
          %v505 = vsub.s32 %v502, %v504
          %v506 = vrot.slane %v478, %v505
          %v507 = vcombine.low %v485, %v492
          %v508 = vcombine.high %v485, %v492
          %v509 = vcombine.low %v499, %v506
          %v510 = vcombine.high %v499, %v506
          %v512 = vunpack.c.l.s4 1966171168
          %v513 = vunpack.c.0.s8 %v512
          %v514 = vlaneseq
          %v515 = vshrl.u32 %v514, 7
          %v516 = vsub.s32 %v513, %v515
          %v517 = vrot.slane %v507, %v516
          %v519 = vunpack.c.l.s4 1966171168
          %v520 = vunpack.c.0.s8 %v519
          %v521 = vlaneseq
          %v522 = vshrl.u32 %v521, 7
          %v523 = vsub.s32 %v520, %v522
          %v524 = vrot.slane %v508, %v523
          %v526 = vunpack.c.l.s4 1966171168
          %v527 = vunpack.c.0.s8 %v526
          %v528 = vlaneseq
          %v529 = vshrl.u32 %v528, 7
          %v530 = vsub.s32 %v527, %v529
          %v531 = vrot.slane %v509, %v530
          %v533 = vunpack.c.l.s4 1966171168
          %v534 = vunpack.c.0.s8 %v533
          %v535 = vlaneseq
          %v536 = vshrl.u32 %v535, 7
          %v537 = vsub.s32 %v534, %v536
          %v538 = vrot.slane %v510, %v537
          %v539 = vcombine.low %v517, %v531
          %v540 = vcombine.high %v517, %v531
          %v541 = vcombine.low %v524, %v538
          %v542 = vcombine.high %v524, %v538
          %v547 = vadd.f32 %v455, %v539
          %v548 = vadd.f32 %v456, %v541
          %v549 = vadd.f32 %v457, %v540
          %v550 = vadd.f32 %v458, %v542
          %551 = vst [vmem:[#allocation2] sm:$0xff] %v547
          %552 = vst [vmem:[#allocation2 + $0x8] sm:$0xff] %v548
          %553 = vst [vmem:[#allocation2 + $0x10] sm:$0xff] %v549
          %554 = vst [vmem:[#allocation2 + $0x18] sm:$0xff] %v550
        $region44: #{tpu_custom_call.1} parent=27 // pred_fallthru
          _
        %p555 = scmp.eq.s32.totalorder %s258, 0
        // Predicated region
        $region45: #{tpu_custom_call.1} parent=27 // pred_check
          %p556 = pneg %p555
        $region46: #{tpu_custom_call.1} parent=27 // pred_check_branch
          %558 = sbr.rel (%p556) target = $region48
        $region47: #{tpu_custom_call.1} parent=27 // pred_region
          %v559 = vlaneseq
          %v560 = vshrl.u32 %v559, 7
          %s561 = smul.u32 %s258, 8
          %v562 = vstv %s561
          %v563 = vadd.s32 %v562, %v560
          %vm564 = vcmp.lt.s32.totalorder %v563, 1
          %v573 = vcombine.low %v443, %v444
          %v574 = vcombine.low %v445, %v446
          %v575 = vcombine.low %v447, %v448
          %v576 = vcombine.low %v449, %v450
          %v578 = vunpack.c.l.s4 1966171168
          %v579 = vunpack.c.0.s8 %v578
          %v580 = vlaneseq
          %v581 = vshrl.u32 %v580, 7
          %v582 = vsub.s32 %v579, %v581
          %v583 = vrot.slane %v573, %v582
          %v585 = vunpack.c.l.s4 1966171168
          %v586 = vunpack.c.0.s8 %v585
          %v587 = vlaneseq
          %v588 = vshrl.u32 %v587, 7
          %v589 = vsub.s32 %v586, %v588
          %v590 = vrot.slane %v574, %v589
          %v592 = vunpack.c.l.s4 1966171168
          %v593 = vunpack.c.0.s8 %v592
          %v594 = vlaneseq
          %v595 = vshrl.u32 %v594, 7
          %v596 = vsub.s32 %v593, %v595
          %v597 = vrot.slane %v575, %v596
          %v599 = vunpack.c.l.s4 1966171168
          %v600 = vunpack.c.0.s8 %v599
          %v601 = vlaneseq
          %v602 = vshrl.u32 %v601, 7
          %v603 = vsub.s32 %v600, %v602
          %v604 = vrot.slane %v576, %v603
          %v605 = vcombine.low %v583, %v590
          %v606 = vcombine.high %v583, %v590
          %v607 = vcombine.low %v597, %v604
          %v608 = vcombine.high %v597, %v604
          %v610 = vunpack.c.l.s4 1966171168
          %v611 = vunpack.c.0.s8 %v610
          %v612 = vlaneseq
          %v613 = vshrl.u32 %v612, 7
          %v614 = vsub.s32 %v611, %v613
          %v615 = vrot.slane %v605, %v614
          %v617 = vunpack.c.l.s4 1966171168
          %v618 = vunpack.c.0.s8 %v617
          %v619 = vlaneseq
          %v620 = vshrl.u32 %v619, 7
          %v621 = vsub.s32 %v618, %v620
          %v622 = vrot.slane %v606, %v621
          %v624 = vunpack.c.l.s4 1966171168
          %v625 = vunpack.c.0.s8 %v624
          %v626 = vlaneseq
          %v627 = vshrl.u32 %v626, 7
          %v628 = vsub.s32 %v625, %v627
          %v629 = vrot.slane %v607, %v628
          %v631 = vunpack.c.l.s4 1966171168
          %v632 = vunpack.c.0.s8 %v631
          %v633 = vlaneseq
          %v634 = vshrl.u32 %v633, 7
          %v635 = vsub.s32 %v632, %v634
          %v636 = vrot.slane %v608, %v635
          %v637 = vcombine.low %v615, %v629
          %v638 = vcombine.high %v615, %v629
          %v639 = vcombine.low %v622, %v636
          %v640 = vcombine.high %v622, %v636
          %v645 = vsel %vm564, %v637, 0.0
          %v646 = vsel %vm564, %v639, 0.0
          %v647 = vsel %vm564, %v638, 0.0
          %v648 = vsel %vm564, %v640, 0.0
          %v649 = vld [vmem:[#allocation2] sm:$0xff]
          %v650 = vld [vmem:[#allocation2 + $0x8] sm:$0xff]
          %v651 = vld [vmem:[#allocation2 + $0x10] sm:$0xff]
          %v652 = vld [vmem:[#allocation2 + $0x18] sm:$0xff]
          %v653 = vadd.f32 %v645, 0.0
          %v654 = vadd.f32 %v646, 0.0
          %v655 = vadd.f32 %v647, 0.0
          %v656 = vadd.f32 %v648, 0.0
          %v657 = vadd.f32 %v649, %v653
          %v658 = vadd.f32 %v650, %v654
          %v659 = vadd.f32 %v651, %v655
          %v660 = vadd.f32 %v652, %v656
          %661 = vst [vmem:[#allocation2] sm:$0xff] %v657
          %662 = vst [vmem:[#allocation2 + $0x8] sm:$0xff] %v658
          %663 = vst [vmem:[#allocation2 + $0x10] sm:$0xff] %v659
          %664 = vst [vmem:[#allocation2 + $0x18] sm:$0xff] %v660
        $region48: #{tpu_custom_call.1} parent=27 // pred_fallthru
          _
        // Predicated region
        $region49: #{tpu_custom_call.1} parent=27 // pred_check
          %p665 = pneg %p259
        $region50: #{tpu_custom_call.1} parent=27 // pred_check_branch
          %667 = sbr.rel (%p665) target = $region52
        $region51: #{tpu_custom_call.1} parent=27 // pred_region
          %v668 = vld [vmem:[#allocation2] sm:$0xff]
          %v669 = vld [vmem:[#allocation2 + $0x8] sm:$0xff]
          %v670 = vld [vmem:[#allocation2 + $0x10] sm:$0xff]
          %v671 = vld [vmem:[#allocation2 + $0x18] sm:$0xff]
          %v672 = vadd.f32 %v668, %v669
          %v673 = vadd.f32 %v672, %v670
          %v674 = vadd.f32 %v673, %v671
          %675 = vadd.xlane.f32.xlu0 %v674
          %v676 = vpop.xlane.xlu0 %675
          %v677 = vrot.slane %v676, 4
          %v678 = vadd.f32 %v676, %v677
          %v679 = vrot.slane %v678, 2
          %v680 = vadd.f32 %v678, %v679
          %v681 = vrot.slane %v680, 1
          %v682 = vadd.f32 %v680, %v681
          %s683 = vtos %v682
          %v684 = vstv %s683
          %685 = vst [vmem:[%s243] sm:$0xff] %v684
        $region52: #{tpu_custom_call.1} parent=27 // pred_fallthru
          _
        %s686 = sand.u32 %s106, 1
        %s687 = scalar_lea.sflag [#allocation5], %s686
        %s688 = sand.u32 %s106, 1
        %s689 = smul.addr %s688, 8
        %s690 = scalar_lea.vmem [#allocation8], %s689
        // Predicated region
        $region53: #{tpu_custom_call.1} parent=27 // pred_check
          %p691 = pneg %p116
        $region54: #{tpu_custom_call.1} parent=27 // pred_check_branch
          %693 = sbr.rel (%p691) target = $region56
        $region55: #{tpu_custom_call.1} parent=27 // pred_region
          %s695 = ssub.s32 128, 128
          %696 = vsyncadd %s687, %s695
          %s697 = smul.addr %s26, 128
          %s698 = scalar_lea.hbm %s2, %s697
          %s700 = sshll.u32 %s690, 4
          %s701 = int_to_ptr.vmem [resolvable:$true] %s700
          %703 = dma.vmem_to_hbm [thread:$0]  %s701, 128, %s698, %s687
        $region56: #{tpu_custom_call.1} parent=27 // pred_fallthru
          _
      $region28: #{tpu_custom_call.1} parent=5 // pred_fallthru
        _
      %p704 = scmp.le.s32.totalorder 2, %s17
      // Predicated region
      $region57: #{tpu_custom_call.1} parent=5 // pred_check
        %p705 = pneg %p704
      $region58: #{tpu_custom_call.1} parent=5 // pred_check_branch
        %707 = sbr.rel (%p705) target = $region60
      $region59: #{tpu_custom_call.1} parent=5 // pred_region
        %s708 = ssub.s32 %s17, 2
        // Predicated region
        $region61: #{tpu_custom_call.1} parent=59 // pred_check
          %p709 = pneg %p122
        $region62: #{tpu_custom_call.1} parent=59 // pred_check_branch
          %711 = sbr.rel (%p709) target = $region64
        $region63: #{tpu_custom_call.1} parent=59 // pred_region
          %s712 = sand.u32 %s107, 1
          %s713 = scalar_lea.sflag [#allocation5], %s712
          %s714 = sand.u32 %s107, 1
          %s715 = smul.addr %s714, 8
          %s716 = scalar_lea.vmem [#allocation8], %s715
          %717 = dma.done %s713, 128
        $region64: #{tpu_custom_call.1} parent=59 // pred_fallthru
          _
      $region60: #{tpu_custom_call.1} parent=5 // pred_fallthru
        _
    $region6: #{tpu_custom_call.1} parent=1 // loop_footer
      %s21 = sadd.s32 1, %s17
    $region7: #{tpu_custom_call.1} parent=1 // loop_footer_branch
      %16 = sbr.rel target = $region3
    $region8: #{tpu_custom_call.1} parent=1 // loop_exit
      _
    %718 = vsyncpa [#allocation4], 1
    %s719 = scalar_lea.sflag [#allocation4], 1
    %720 = vsyncpa %s719, 1
    %721 = vsyncpa [#allocation7], 1
    %s722 = scalar_lea.sflag [#allocation7], 1
    %723 = vsyncpa %s722, 1
    %724 = vsyncpa [#allocation5], 1
    %s725 = scalar_lea.sflag [#allocation5], 1
    %726 = vsyncpa %s725, 1

</llo_original>
